<compile_context>
chip_gen: v5e
topology: v5e:2x2
jax: 0.10.0
libtpu: 0.0.40
codegen_flags: <defaults>
</compile_context>

<pallas_src>
import functools

import jax
import jax.numpy as jnp
from jax import lax
from jax.experimental import pallas as pl
from jax.experimental.pallas import tpu as pltpu

BN_EPS = 1e-5


def _round_up(x, m):
    return ((x + m - 1) // m) * m


def vnagg_gin_kernel(batch_ref, emb_ref, vn_ref,
                     w1_ref, g1_ref, be1_ref,
                     w2_ref, g2_ref, be2_ref,
                     out_ref, g_acc, *, n_valid, mask_tail):
    i = pl.program_id(0)
    B = g_acc.shape[0]
    TN = emb_ref.shape[0]

    @pl.when(i == 0)
    def _init():
        g_acc[...] = jnp.zeros_like(g_acc)

    # --- global_add_pool tile: one-hot [B, TN] @ emb [TN, D] on the MXU -----
    emb = emb_ref[...]
    if mask_tail:
        # Zero out ragged-tail rows (node index >= N).  This keeps whatever is
        # in the partial boundary block's VMEM buffer (stale data / garbage)
        # out of the MXU accumulate and makes tail batch-id garbage harmless.
        row = i * TN + lax.broadcasted_iota(jnp.int32, (TN, 1), 0)
        emb = jnp.where(row < n_valid, emb, 0.0)

    gids = lax.broadcasted_iota(jnp.int32, (B, TN), 0)            # [B, TN]
    one_hot = (batch_ref[...] == gids).astype(jnp.bfloat16)       # [B, TN]
    g_acc[...] += jnp.dot(one_hot, emb.astype(jnp.bfloat16),
                          preferred_element_type=jnp.float32)     # [B, D] f32

    # --- fused MLP + BatchNorm + ReLU epilogue on the last grid step --------
    @pl.when(i == pl.num_programs(0) - 1)
    def _epilogue():
        h = vn_ref[...] + g_acc[...]                              # [B, D] f32

        # Linear(D -> 2D); bias omitted (cancelled by training-mode BN).
        h = jnp.dot(h, w1_ref[...], preferred_element_type=jnp.float32)
        mu = jnp.mean(h, axis=0, keepdims=True)
        var = jnp.mean(jnp.square(h - mu), axis=0, keepdims=True)
        scale = g1_ref[...] * lax.rsqrt(var + BN_EPS)
        shift = be1_ref[...] - mu * scale
        h = jnp.maximum(h * scale + shift, 0.0)

        # Linear(2D -> D); bias omitted (cancelled by the outer BN).
        h = jnp.dot(h, w2_ref[...], preferred_element_type=jnp.float32)
        mu2 = jnp.mean(h, axis=0, keepdims=True)
        var2 = jnp.mean(jnp.square(h - mu2), axis=0, keepdims=True)
        scale2 = g2_ref[...] * lax.rsqrt(var2 + BN_EPS)
        shift2 = be2_ref[...] - mu2 * scale2
        out_ref[...] = jnp.maximum(h * scale2 + shift2, 0.0).astype(out_ref.dtype)


@functools.partial(jax.jit, static_argnames=("tn",))
def vnagg_gin(virtual_node, embeddings, batch_vector, params, *, tn=8192):
    """virtual_node [B, D] f32, embeddings [N, D] f32, batch_vector [N] int."""
    B, D = virtual_node.shape
    w1, b1, g1, be1, w2, b2, g2, be2 = params
    del b1, b2  # exactly cancelled by training-mode BatchNorm mean subtraction
    D2 = w1.shape[1]

    N = embeddings.shape[0]
    if N == 0:
        # `if batch_vector.size(0) > 0 else G = zeros`: dummy rows, all masked
        # out in-kernel via n_valid = 0, so the pooled sum is exactly zero.
        embeddings = jnp.zeros((128, D), jnp.float32)
        batch_vector = jnp.zeros((128,), jnp.int32)
        n_valid = 0
    else:
        n_valid = N
    n_rows = embeddings.shape[0]

    # Node tile: multiple of 128 lanes (batch-id row is lane-major), clamped so
    # a single tile is not wastefully larger than the (rounded-up) node count.
    tn = _round_up(max(int(tn), 128), 128)
    tn_eff = min(tn, _round_up(n_rows, 128))
    num_steps = int(pl.cdiv(n_rows, tn_eff))
    mask_tail = (num_steps * tn_eff) != n_valid

    # No padded copies: stream embeddings as-is; tiny params passed directly.
    emb = embeddings.astype(jnp.float32)
    batch_row = batch_vector.astype(jnp.int32).reshape(1, n_rows)
    vn = virtual_node.astype(jnp.float32)
    w1f = w1.astype(jnp.float32)
    w2f = w2.astype(jnp.float32)
    g1r = g1.reshape(1, D2).astype(jnp.float32)
    be1r = be1.reshape(1, D2).astype(jnp.float32)
    g2r = g2.reshape(1, D).astype(jnp.float32)
    be2r = be2.reshape(1, D).astype(jnp.float32)

    cost = pl.CostEstimate(
        flops=2 * n_rows * B * D + 4 * B * D * D2,
        transcendentals=D2 + D,
        bytes_accessed=(emb.size * 4 + batch_row.size * 4 + vn.size * 4
                        + (w1f.size + w2f.size) * 4
                        + (g1r.size + be1r.size + g2r.size + be2r.size) * 4
                        + B * D * 4),
    )

    kernel = functools.partial(vnagg_gin_kernel,
                               n_valid=n_valid, mask_tail=mask_tail)

    out = pl.pallas_call(
        kernel,
        out_shape=jax.ShapeDtypeStruct((B, D), jnp.float32),
        grid_spec=pltpu.PrefetchScalarGridSpec(
            num_scalar_prefetch=0,
            grid=(num_steps,),
            in_specs=[
                pl.BlockSpec((1, tn_eff), lambda i: (0, i)),   # batch-id row
                pl.BlockSpec((tn_eff, D), lambda i: (i, 0)),   # emb tile (native D)
                pl.BlockSpec((B, D), lambda i: (0, 0)),        # virtual node
                pl.BlockSpec((D, D2), lambda i: (0, 0)),       # W1^T
                pl.BlockSpec((1, D2), lambda i: (0, 0)),       # gamma1
                pl.BlockSpec((1, D2), lambda i: (0, 0)),       # beta1
                pl.BlockSpec((D2, D), lambda i: (0, 0)),       # W2^T
                pl.BlockSpec((1, D), lambda i: (0, 0)),        # gamma2
                pl.BlockSpec((1, D), lambda i: (0, 0)),        # beta2
            ],
            out_specs=pl.BlockSpec((B, D), lambda i: (0, 0)),
            scratch_shapes=[pltpu.VMEM((B, D), jnp.float32)],
        ),
        compiler_params=pltpu.CompilerParams(
            dimension_semantics=("arbitrary",)),
        cost_estimate=cost,
    )(batch_row, emb, vn, w1f, g1r, be1r, w2f, g2r, be2r)
    return out


def init_params(key, dim):
    """Deterministic synthetic parameters (shapes match the PyTorch module)."""
    k1, k2, k3, k4, k5, k6, k7, k8 = jax.random.split(key, 8)
    d2 = 2 * dim
    # Linear(dim, 2*dim): weight [2D, D], bias [2D]  -> pass transposed [D, 2D]
    w1t = jax.random.normal(k1, (dim, d2), jnp.float32) * 0.1
    b1 = jax.random.normal(k2, (1, d2), jnp.float32) * 0.1
    # BatchNorm1d(2*dim) affine params
    g1 = 1.0 + 0.1 * jax.random.normal(k3, (1, d2), jnp.float32)
    be1 = 0.1 * jax.random.normal(k4, (1, d2), jnp.float32)
    # Linear(2*dim, dim): weight [D, 2D] -> transposed [2D, D]
    w2t = jax.random.normal(k5, (d2, dim), jnp.float32) * 0.1
    b2 = jax.random.normal(k6, (1, dim), jnp.float32) * 0.1
    # Outer BatchNorm1d(dim) affine params
    g2 = 1.0 + 0.1 * jax.random.normal(k7, (1, dim), jnp.float32)
    be2 = 0.1 * jax.random.normal(k8, (1, dim), jnp.float32)
    return (w1t, b1, g1, be1, w2t, b2, g2, be2)


def vnagg_gin_ref(virtual_node, embeddings, batch_vector, params):
    """Pure-JAX f32 reference (faithful to PyTorch training-mode forward)."""
    w1, b1, g1, be1, w2, b2, g2, be2 = params
    B, D = virtual_node.shape
    if batch_vector.shape[0] > 0:
        G = jnp.zeros((B, D), jnp.float32).at[batch_vector].add(embeddings)
    else:
        G = jnp.zeros_like(virtual_node)
    h = virtual_node + G
    h = h @ w1 + b1
    mu = h.mean(0, keepdims=True)
    var = ((h - mu) ** 2).mean(0, keepdims=True)
    h = jnp.maximum((h - mu) * lax.rsqrt(var + BN_EPS) * g1 + be1, 0.0)
    h = h @ w2 + b2
    mu2 = h.mean(0, keepdims=True)
    var2 = ((h - mu2) ** 2).mean(0, keepdims=True)
    return jnp.maximum((h - mu2) * lax.rsqrt(var2 + BN_EPS) * g2 + be2, 0.0)


if __name__ == "__main__":
    key = jax.random.PRNGKey(0)
    kv, ke, kb, kp = jax.random.split(key, 4)

    B = 16          # number of graphs (batch size)
    N = 1200        # total nodes across the batch (ragged tail at tn=512)
    D = 32          # feature dim

    virtual_node = jax.random.normal(kv, (B, D), jnp.float32)
    embeddings = jax.random.normal(ke, (N, D), jnp.float32)
    # each node assigned to one of the B graphs (sorted, as in PyG batches)
    batch_vector = jnp.sort(jax.random.randint(kb, (N,), 0, B, jnp.int32))

    params = init_params(kp, D)

    # Small tn here to exercise a multi-step reduction grid (3 steps) plus the
    # in-kernel ragged-tail masking; the production default is tn=8192.
    out = vnagg_gin(virtual_node, embeddings, batch_vector, params, tn=512)
    out = jax.block_until_ready(out)

    ref = vnagg_gin_ref(virtual_node, embeddings, batch_vector, params)
    assert out.shape == (B, D)
    # bf16 MXU pooling operands with f32 accumulation: small numeric slack.
    assert jnp.allclose(out, ref, atol=5e-2, rtol=5e-2), (
        "mismatch vs reference, max|diff|="
        f"{float(jnp.max(jnp.abs(out - ref)))}")

    # Empty-graph branch: batch_vector.size(0) == 0  ->  G = zeros.
    emb0 = jnp.zeros((0, D), jnp.float32)
    bv0 = jnp.zeros((0,), jnp.int32)
    out0 = jax.block_until_ready(vnagg_gin(virtual_node, emb0, bv0, params))
    ref0 = vnagg_gin_ref(virtual_node, emb0, bv0, params)
    assert jnp.allclose(out0, ref0, atol=5e-2, rtol=5e-2), (
        "empty-batch mismatch vs reference, max|diff|="
        f"{float(jnp.max(jnp.abs(out0 - ref0)))}")

    print("KERNEL_OK")
</pallas_src>

<mosaic_0001>
module attributes {stable_mosaic.version = 11 : i64} {
  func.func @vnagg_gin_kernel(%arg0: i32, %arg1: memref<1x512xi32, #tpu.memory_space<vmem>>, %arg2: memref<512x32xf32, #tpu.memory_space<vmem>>, %arg3: memref<16x32xf32, #tpu.memory_space<vmem>>, %arg4: memref<32x64xf32, #tpu.memory_space<vmem>>, %arg5: memref<1x64xf32, #tpu.memory_space<vmem>>, %arg6: memref<1x64xf32, #tpu.memory_space<vmem>>, %arg7: memref<64x32xf32, #tpu.memory_space<vmem>>, %arg8: memref<1x32xf32, #tpu.memory_space<vmem>>, %arg9: memref<1x32xf32, #tpu.memory_space<vmem>>, %arg10: memref<16x32xf32, #tpu.memory_space<vmem>>, %arg11: memref<16x32xf32, #tpu.memory_space<vmem>>) attributes {dimension_semantics = [#tpu.dimension_semantics<arbitrary>], iteration_bounds = array<i64: 3>, scalar_prefetch = 0 : i64, scratch_operands = 1 : i64, tpu.core_type = #tpu.core_type<tc>, window_params = [{transform_indices = @transform_0, window_bounds = array<i64: 1, 512>}, {transform_indices = @transform_1, window_bounds = array<i64: 512, 32>}, {pipeline_mode = #tpu.pipeline_mode<synchronous>, transform_indices = @transform_2, window_bounds = array<i64: 16, 32>}, {pipeline_mode = #tpu.pipeline_mode<synchronous>, transform_indices = @transform_3, window_bounds = array<i64: 32, 64>}, {pipeline_mode = #tpu.pipeline_mode<synchronous>, transform_indices = @transform_4, window_bounds = array<i64: 1, 64>}, {pipeline_mode = #tpu.pipeline_mode<synchronous>, transform_indices = @transform_5, window_bounds = array<i64: 1, 64>}, {pipeline_mode = #tpu.pipeline_mode<synchronous>, transform_indices = @transform_6, window_bounds = array<i64: 64, 32>}, {pipeline_mode = #tpu.pipeline_mode<synchronous>, transform_indices = @transform_7, window_bounds = array<i64: 1, 32>}, {pipeline_mode = #tpu.pipeline_mode<synchronous>, transform_indices = @transform_8, window_bounds = array<i64: 1, 32>}, {pipeline_mode = #tpu.pipeline_mode<synchronous>, transform_indices = @transform_9, window_bounds = array<i64: 16, 32>}]} {
    %c0_i32 = arith.constant 0 : i32
    %0 = arith.cmpi eq, %arg0, %c0_i32 : i32
    %1 = arith.extui %0 : i1 to i32
    %c0_i32_0 = arith.constant 0 : i32
    %2 = arith.cmpi ne, %1, %c0_i32_0 : i32
    scf.if %2 {
      %cst_10 = arith.constant 0.000000e+00 : f32
      %29 = vector.broadcast %cst_10 : f32 to vector<16x32xf32>
      %c0_11 = arith.constant 0 : index
      %c0_12 = arith.constant 0 : index
      %30 = vector.load %arg11[%c0_11, %c0_12] : memref<16x32xf32, #tpu.memory_space<vmem>>, vector<16x32xf32>
      tpu.vector_store %arg11[%c0_11, %c0_12], %29 {strides = array<i32>} : memref<16x32xf32, #tpu.memory_space<vmem>>, vector<16x32xf32>,
    } else {
    }
    %c0 = arith.constant 0 : index
    %c0_1 = arith.constant 0 : index
    %3 = vector.load %arg2[%c0, %c0_1] : memref<512x32xf32, #tpu.memory_space<vmem>>, vector<512x32xf32>
    %c512_i32 = arith.constant 512 : i32
    %4 = arith.muli %arg0, %c512_i32 : i32
    %5 = tpu.iota {dimensions = array<i32: 0>} : vector<512x1xi32>
    %6 = vector.broadcast %4 : i32 to vector<512x1xi32>
    %7 = arith.addi %6, %5 : vector<512x1xi32>
    %c1200_i32 = arith.constant 1200 : i32
    %8 = vector.broadcast %c1200_i32 : i32 to vector<512x1xi32>
    %9 = arith.cmpi slt, %7, %8 : vector<512x1xi32>
    %cst = arith.constant 0.000000e+00 : f32
    %10 = vector.shape_cast %9 : vector<512x1xi1> to vector<512x1xi1>
    %11 = vector.broadcast %10 : vector<512x1xi1> to vector<512x32xi1>
    %12 = vector.broadcast %cst : f32 to vector<512x32xf32>
    %13 = arith.select %11, %3, %12 : vector<512x32xi1>, vector<512x32xf32>
    %14 = tpu.iota {dimensions = array<i32: 0>} : vector<16x512xi32>
    %c0_2 = arith.constant 0 : index
    %c0_3 = arith.constant 0 : index
    %15 = vector.load %arg1[%c0_2, %c0_3] : memref<1x512xi32, #tpu.memory_space<vmem>>, vector<1x512xi32>
    %16 = vector.broadcast %15 : vector<1x512xi32> to vector<16x512xi32>
    %17 = arith.cmpi eq, %16, %14 : vector<16x512xi32>
    %18 = arith.extui %17 : vector<16x512xi1> to vector<16x512xi32>
    %19 = arith.sitofp %18 : vector<16x512xi32> to vector<16x512xf32>
    %20 = arith.truncf %19 : vector<16x512xf32> to vector<16x512xbf16>
    %c0_4 = arith.constant 0 : index
    %c0_5 = arith.constant 0 : index
    %21 = vector.load %arg11[%c0_4, %c0_5] : memref<16x32xf32, #tpu.memory_space<vmem>>, vector<16x32xf32>
    %22 = arith.truncf %13 : vector<512x32xf32> to vector<512x32xbf16>
    %cst_6 = arith.constant dense<0.000000e+00> : vector<16x32xf32>
    %23 = tpu.matmul %20, %22, %cst_6 {dimension_numbers = #tpu.dot_dimension_numbers<[1], [0], [0], [1], [0, 0, 1, 1], [], []>} : vector<16x512xbf16>, vector<512x32xbf16>, vector<16x32xf32> -> vector<16x32xf32>
    %24 = arith.addf %21, %23 : vector<16x32xf32>
    %c0_7 = arith.constant 0 : index
    %c0_8 = arith.constant 0 : index
    %25 = vector.load %arg11[%c0_7, %c0_8] : memref<16x32xf32, #tpu.memory_space<vmem>>, vector<16x32xf32>
    tpu.vector_store %arg11[%c0_7, %c0_8], %24 {strides = array<i32>} : memref<16x32xf32, #tpu.memory_space<vmem>>, vector<16x32xf32>,
    %c2_i32 = arith.constant 2 : i32
    %26 = arith.cmpi eq, %arg0, %c2_i32 : i32
    %27 = arith.extui %26 : i1 to i32
    %c0_i32_9 = arith.constant 0 : i32
    %28 = arith.cmpi ne, %27, %c0_i32_9 : i32
    scf.if %28 {
      %c0_10 = arith.constant 0 : index
      %c0_11 = arith.constant 0 : index
      %29 = vector.load %arg3[%c0_10, %c0_11] : memref<16x32xf32, #tpu.memory_space<vmem>>, vector<16x32xf32>
      %c0_12 = arith.constant 0 : index
      %c0_13 = arith.constant 0 : index
      %30 = vector.load %arg11[%c0_12, %c0_13] : memref<16x32xf32, #tpu.memory_space<vmem>>, vector<16x32xf32>
      %31 = arith.addf %29, %30 : vector<16x32xf32>
      %c0_14 = arith.constant 0 : index
      %c0_15 = arith.constant 0 : index
      %32 = vector.load %arg4[%c0_14, %c0_15] : memref<32x64xf32, #tpu.memory_space<vmem>>, vector<32x64xf32>
      %cst_16 = arith.constant dense<0.000000e+00> : vector<16x64xf32>
      %33 = tpu.matmul %31, %32, %cst_16 {dimension_numbers = #tpu.dot_dimension_numbers<[1], [0], [0], [1], [0, 0, 1, 1], [], []>} : vector<16x32xf32>, vector<32x64xf32>, vector<16x64xf32> -> vector<16x64xf32>
      %cst_17 = arith.constant dense<0.000000e+00> : vector<64xf32>
      %34 = vector.multi_reduction <add>, %33, %cst_17 [0] : vector<16x64xf32> to vector<64xf32>
      %35 = vector.shape_cast %34 : vector<64xf32> to vector<1x64xf32>
      %cst_18 = arith.constant 1.600000e+01 : f32
      %36 = vector.broadcast %cst_18 : f32 to vector<1x64xf32>
      %37 = arith.divf %35, %36 : vector<1x64xf32>
      %38 = vector.broadcast %37 : vector<1x64xf32> to vector<16x64xf32>
      %39 = arith.subf %33, %38 : vector<16x64xf32>
      %40 = arith.mulf %39, %39 : vector<16x64xf32>
      %cst_19 = arith.constant dense<0.000000e+00> : vector<64xf32>
      %41 = vector.multi_reduction <add>, %40, %cst_19 [0] : vector<16x64xf32> to vector<64xf32>
      %42 = vector.shape_cast %41 : vector<64xf32> to vector<1x64xf32>
      %cst_20 = arith.constant 1.600000e+01 : f32
      %43 = vector.broadcast %cst_20 : f32 to vector<1x64xf32>
      %44 = arith.divf %42, %43 : vector<1x64xf32>
      %c0_21 = arith.constant 0 : index
      %c0_22 = arith.constant 0 : index
      %45 = vector.load %arg5[%c0_21, %c0_22] : memref<1x64xf32, #tpu.memory_space<vmem>>, vector<1x64xf32>
      %cst_23 = arith.constant 9.99999974E-6 : f32
      %46 = vector.broadcast %cst_23 : f32 to vector<1x64xf32>
      %47 = arith.addf %44, %46 : vector<1x64xf32>
      %48 = math.rsqrt %47 : vector<1x64xf32>
      %49 = arith.mulf %45, %48 : vector<1x64xf32>
      %c0_24 = arith.constant 0 : index
      %c0_25 = arith.constant 0 : index
      %50 = vector.load %arg6[%c0_24, %c0_25] : memref<1x64xf32, #tpu.memory_space<vmem>>, vector<1x64xf32>
      %51 = arith.mulf %37, %49 : vector<1x64xf32>
      %52 = arith.subf %50, %51 : vector<1x64xf32>
      %53 = vector.broadcast %49 : vector<1x64xf32> to vector<16x64xf32>
      %54 = arith.mulf %33, %53 : vector<16x64xf32>
      %55 = vector.broadcast %52 : vector<1x64xf32> to vector<16x64xf32>
      %56 = arith.addf %54, %55 : vector<16x64xf32>
      %cst_26 = arith.constant 0.000000e+00 : f32
      %57 = vector.broadcast %cst_26 : f32 to vector<16x64xf32>
      %58 = arith.maximumf %56, %57 : vector<16x64xf32>
      %c0_27 = arith.constant 0 : index
      %c0_28 = arith.constant 0 : index
      %59 = vector.load %arg7[%c0_27, %c0_28] : memref<64x32xf32, #tpu.memory_space<vmem>>, vector<64x32xf32>
      %cst_29 = arith.constant dense<0.000000e+00> : vector<16x32xf32>
      %60 = tpu.matmul %58, %59, %cst_29 {dimension_numbers = #tpu.dot_dimension_numbers<[1], [0], [0], [1], [0, 0, 1, 1], [], []>} : vector<16x64xf32>, vector<64x32xf32>, vector<16x32xf32> -> vector<16x32xf32>
      %cst_30 = arith.constant dense<0.000000e+00> : vector<32xf32>
      %61 = vector.multi_reduction <add>, %60, %cst_30 [0] : vector<16x32xf32> to vector<32xf32>
      %62 = vector.shape_cast %61 : vector<32xf32> to vector<1x32xf32>
      %cst_31 = arith.constant 1.600000e+01 : f32
      %63 = vector.broadcast %cst_31 : f32 to vector<1x32xf32>
      %64 = arith.divf %62, %63 : vector<1x32xf32>
      %65 = vector.broadcast %64 : vector<1x32xf32> to vector<16x32xf32>
      %66 = arith.subf %60, %65 : vector<16x32xf32>
      %67 = arith.mulf %66, %66 : vector<16x32xf32>
      %cst_32 = arith.constant dense<0.000000e+00> : vector<32xf32>
      %68 = vector.multi_reduction <add>, %67, %cst_32 [0] : vector<16x32xf32> to vector<32xf32>
      %69 = vector.shape_cast %68 : vector<32xf32> to vector<1x32xf32>
      %cst_33 = arith.constant 1.600000e+01 : f32
      %70 = vector.broadcast %cst_33 : f32 to vector<1x32xf32>
      %71 = arith.divf %69, %70 : vector<1x32xf32>
      %c0_34 = arith.constant 0 : index
      %c0_35 = arith.constant 0 : index
      %72 = vector.load %arg8[%c0_34, %c0_35] : memref<1x32xf32, #tpu.memory_space<vmem>>, vector<1x32xf32>
      %cst_36 = arith.constant 9.99999974E-6 : f32
      %73 = vector.broadcast %cst_36 : f32 to vector<1x32xf32>
      %74 = arith.addf %71, %73 : vector<1x32xf32>
      %75 = math.rsqrt %74 : vector<1x32xf32>
      %76 = arith.mulf %72, %75 : vector<1x32xf32>
      %c0_37 = arith.constant 0 : index
      %c0_38 = arith.constant 0 : index
      %77 = vector.load %arg9[%c0_37, %c0_38] : memref<1x32xf32, #tpu.memory_space<vmem>>, vector<1x32xf32>
      %78 = arith.mulf %64, %76 : vector<1x32xf32>
      %79 = arith.subf %77, %78 : vector<1x32xf32>
      %80 = vector.broadcast %76 : vector<1x32xf32> to vector<16x32xf32>
      %81 = arith.mulf %60, %80 : vector<16x32xf32>
      %82 = vector.broadcast %79 : vector<1x32xf32> to vector<16x32xf32>
      %83 = arith.addf %81, %82 : vector<16x32xf32>
      %cst_39 = arith.constant 0.000000e+00 : f32
      %84 = vector.broadcast %cst_39 : f32 to vector<16x32xf32>
      %85 = arith.maximumf %83, %84 : vector<16x32xf32>
      %c0_40 = arith.constant 0 : index
      %c0_41 = arith.constant 0 : index
      %86 = vector.load %arg10[%c0_40, %c0_41] : memref<16x32xf32, #tpu.memory_space<vmem>>, vector<16x32xf32>
      tpu.vector_store %arg10[%c0_40, %c0_41], %85 {strides = array<i32>} : memref<16x32xf32, #tpu.memory_space<vmem>>, vector<16x32xf32>,
    } else {
    }
    return
  }
  func.func @transform_0(%arg0: i32) -> (i32, i32) {
    %c0_i32 = arith.constant 0 : i32
    %c0_i32_0 = arith.constant 0 : i32
    return %c0_i32, %arg0 : i32, i32
  }
  func.func @transform_1(%arg0: i32) -> (i32, i32) {
    %c0_i32 = arith.constant 0 : i32
    %c0_i32_0 = arith.constant 0 : i32
    return %arg0, %c0_i32 : i32, i32
  }
  func.func @transform_2(%arg0: i32) -> (i32, i32) {
    %c0_i32 = arith.constant 0 : i32
    %c0_i32_0 = arith.constant 0 : i32
    %c0_i32_1 = arith.constant 0 : i32
    return %c0_i32, %c0_i32_0 : i32, i32
  }
  func.func @transform_3(%arg0: i32) -> (i32, i32) {
    %c0_i32 = arith.constant 0 : i32
    %c0_i32_0 = arith.constant 0 : i32
    %c0_i32_1 = arith.constant 0 : i32
    return %c0_i32, %c0_i32_0 : i32, i32
  }
  func.func @transform_4(%arg0: i32) -> (i32, i32) {
    %c0_i32 = arith.constant 0 : i32
    %c0_i32_0 = arith.constant 0 : i32
    %c0_i32_1 = arith.constant 0 : i32
    return %c0_i32, %c0_i32_0 : i32, i32
  }
  func.func @transform_5(%arg0: i32) -> (i32, i32) {
    %c0_i32 = arith.constant 0 : i32
    %c0_i32_0 = arith.constant 0 : i32
    %c0_i32_1 = arith.constant 0 : i32
    return %c0_i32, %c0_i32_0 : i32, i32
  }
  func.func @transform_6(%arg0: i32) -> (i32, i32) {
    %c0_i32 = arith.constant 0 : i32
    %c0_i32_0 = arith.constant 0 : i32
    %c0_i32_1 = arith.constant 0 : i32
    return %c0_i32, %c0_i32_0 : i32, i32
  }
  func.func @transform_7(%arg0: i32) -> (i32, i32) {
    %c0_i32 = arith.constant 0 : i32
    %c0_i32_0 = arith.constant 0 : i32
    %c0_i32_1 = arith.constant 0 : i32
    return %c0_i32, %c0_i32_0 : i32, i32
  }
  func.func @transform_8(%arg0: i32) -> (i32, i32) {
    %c0_i32 = arith.constant 0 : i32
    %c0_i32_0 = arith.constant 0 : i32
    %c0_i32_1 = arith.constant 0 : i32
    return %c0_i32, %c0_i32_0 : i32, i32
  }
  func.func @transform_9(%arg0: i32) -> (i32, i32) {
    %c0_i32 = arith.constant 0 : i32
    %c0_i32_0 = arith.constant 0 : i32
    %c0_i32_1 = arith.constant 0 : i32
    return %c0_i32, %c0_i32_0 : i32, i32
  }
}

</mosaic_0001>

<llo_original>
// kernel: vnagg_gin.1
$region0: #{vnagg_gin.1}
  #allocation0 [shape = 'u32[]', space=smem, size = 0x4, offset = 0x4, fixed_abs, tag = 'smem constant byte address 0x4 - core index']
  #allocation1 [shape = 'u32[72,128]{1,0:T(1,128)}', space=vmem, size = 0x9000, scoped, tag = 'internal scratch']
  #allocation2 [shape = 'f32[16,32]{1,0:T(8,128)}', space=vmem, size = 0x2000, scoped, tag = 'scratch operand']
  %s0 = inlined_call_operand.vmem [shape: s32[1,1200], index: 0, kind: input, shape index: {}]
  %s1 = inlined_call_operand.vmem [shape: f32[1200,32], index: 1, kind: input, shape index: {}]
  %s2 = inlined_call_operand.vmem [shape: f32[16,32], index: 2, kind: input, shape index: {}]
  %s3 = inlined_call_operand.vmem [shape: f32[32,64], index: 3, kind: input, shape index: {}]
  %s4 = inlined_call_operand.vmem [shape: f32[1,64], index: 4, kind: input, shape index: {}]
  %s5 = inlined_call_operand.vmem [shape: f32[1,64], index: 5, kind: input, shape index: {}]
  %s6 = inlined_call_operand.vmem [shape: f32[64,32], index: 6, kind: input, shape index: {}]
  %s7 = inlined_call_operand.vmem [shape: f32[1,32], index: 7, kind: input, shape index: {}]
  %s8 = inlined_call_operand.vmem [shape: f32[1,32], index: 8, kind: input, shape index: {}]
  %s9 = inlined_call_operand.hbm [shape: f32[16,32], index: 9, kind: output, shape index: {}]
  %s10 = sld [smem:[#allocation0]]
  $region77: #{vnagg_gin.1} parent=0
    _
  %s12 = ssub.s32 1, %s10
  %s13 = scalar_select 0, %s12, %s10
  $region1: #{vnagg_gin.1} parent=0
    #allocation3 [shape = 'u8[8192]{0}', space=vmem, size = 0x2000, scoped, tag = 'output window, operand 0, single buffered']
    #allocation4 [shape = 's32[2]{0}', space=sflag, size = 0x8, scoped, tag = 'scoped memory for vnagg_gin.1']
    %14 = vsyncpa [#allocation4], 0
    loop: start=0, step=1, limit=5
    $region2: #{vnagg_gin.1} parent=1 // loop_pre_header
      _
    $region3: #{vnagg_gin.1} parent=1 // loop_header
      %s16 = sphi 0, %s20
      %p17 = scmp.ge.s32.totalorder %s16, 5
      %s26 = sphi 0, %s28
      %s29 = sphi 0, %s26
      %s30 = sphi 0, %s29
      %s46 = sphi 0, %s30
      %s52 = sphi 0, %s54
      %s55 = sphi 0, %s52
      %s56 = sphi 0, %s55
      %s72 = sphi 0, %s56
      %s76 = sphi 0, %s76
      %s78 = sphi 0, %s76
      %s79 = sphi 0, %s78
      %s93 = sphi 0, %s79
      %s97 = sphi 0, %s97
      %s99 = sphi 0, %s97
      %s100 = sphi 0, %s99
      %s114 = sphi 0, %s100
      %s118 = sphi 0, %s118
      %s120 = sphi 0, %s118
      %s121 = sphi 0, %s120
      %s135 = sphi 0, %s121
      %s139 = sphi 0, %s139
      %s141 = sphi 0, %s139
      %s142 = sphi 0, %s141
      %s156 = sphi 0, %s142
      %s160 = sphi 0, %s160
      %s162 = sphi 0, %s160
      %s163 = sphi 0, %s162
      %s177 = sphi 0, %s163
      %s181 = sphi 0, %s181
      %s183 = sphi 0, %s181
      %s184 = sphi 0, %s183
      %s198 = sphi 0, %s184
      %s202 = sphi 0, %s202
      %s204 = sphi 0, %s202
      %s205 = sphi 0, %s204
      %s219 = sphi 0, %s205
      %s223 = sphi 0, %s223
      %s225 = sphi 0, %s223
      %s226 = sphi 0, %s225
      %s240 = sphi 0, %s226
    $region4: #{vnagg_gin.1} parent=1 // loop_header_branch
      %19 = sbr.rel (%p17) target = $region8
    $region5: #{vnagg_gin.1} parent=1 // loop_body
      %s21 = ssub.s32 %s16, 1
      %s22 = ssub.s32 %s16, 2
      %s23 = sadd.s32 %s16, 1
      %s24 = ssub.s32 %s16, %s23
      %p25 = scmp.eq.s32.totalorder %s24, 0
      %s27 = sadd.s32 %s26, 1
      %s28 = scalar_select %p25, %s26, %s27
      %p31 = pneg %p25
      %p32 = scmp.eq.s32.totalorder %s16, 2
      %p33 = por %p31, %p32
      %p34 = scmp.ne.s32.totalorder %s26, %s29
      %p35 = scmp.eq.s32.totalorder %s16, 0
      %p36 = por %p34, %p35
      %p37 = scmp.ne.s32.totalorder %s26, %s29
      %p38 = scmp.eq.s32.totalorder %s21, 2
      %p39 = por %p37, %p38
      %p40 = scmp.ne.s32.totalorder %s29, %s30
      %p41 = scmp.eq.s32.totalorder %s21, 0
      %p42 = por %p40, %p41
      %p43 = scmp.ne.s32.totalorder %s29, %s30
      %p44 = scmp.eq.s32.totalorder %s22, 2
      %p45 = por %p43, %p44
      %p47 = scmp.ne.s32.totalorder %s30, %s46
      %p48 = scmp.eq.s32.totalorder %s22, 0
      %p49 = por %p47, %p48
      %s50 = ssub.s32 %s16, %s23
      %p51 = scmp.eq.s32.totalorder %s50, 0
      %s53 = sadd.s32 %s52, 1
      %s54 = scalar_select %p51, %s52, %s53
      %p57 = pneg %p51
      %p58 = scmp.eq.s32.totalorder %s16, 2
      %p59 = por %p57, %p58
      %p60 = scmp.ne.s32.totalorder %s52, %s55
      %p61 = scmp.eq.s32.totalorder %s16, 0
      %p62 = por %p60, %p61
      %p63 = scmp.ne.s32.totalorder %s52, %s55
      %p64 = scmp.eq.s32.totalorder %s21, 2
      %p65 = por %p63, %p64
      %p66 = scmp.ne.s32.totalorder %s55, %s56
      %p67 = scmp.eq.s32.totalorder %s21, 0
      %p68 = por %p66, %p67
      %p69 = scmp.ne.s32.totalorder %s55, %s56
      %p70 = scmp.eq.s32.totalorder %s22, 2
      %p71 = por %p69, %p70
      %p73 = scmp.ne.s32.totalorder %s56, %s72
      %p74 = scmp.eq.s32.totalorder %s22, 0
      %p75 = por %p73, %p74
      %s77 = sadd.s32 %s76, 1
      %p80 = scmp.eq.s32.totalorder %s16, 2
      %p81 = scmp.ne.s32.totalorder %s76, %s78
      %p82 = scmp.eq.s32.totalorder %s16, 0
      %p83 = por %p81, %p82
      %p84 = scmp.ne.s32.totalorder %s76, %s78
      %p85 = scmp.eq.s32.totalorder %s21, 2
      %p86 = por %p84, %p85
      %p87 = scmp.ne.s32.totalorder %s78, %s79
      %p88 = scmp.eq.s32.totalorder %s21, 0
      %p89 = por %p87, %p88
      %p90 = scmp.ne.s32.totalorder %s78, %s79
      %p91 = scmp.eq.s32.totalorder %s22, 2
      %p92 = por %p90, %p91
      %p94 = scmp.ne.s32.totalorder %s79, %s93
      %p95 = scmp.eq.s32.totalorder %s22, 0
      %p96 = por %p94, %p95
      %s98 = sadd.s32 %s97, 1
      %p101 = scmp.eq.s32.totalorder %s16, 2
      %p102 = scmp.ne.s32.totalorder %s97, %s99
      %p103 = scmp.eq.s32.totalorder %s16, 0
      %p104 = por %p102, %p103
      %p105 = scmp.ne.s32.totalorder %s97, %s99
      %p106 = scmp.eq.s32.totalorder %s21, 2
      %p107 = por %p105, %p106
      %p108 = scmp.ne.s32.totalorder %s99, %s100
      %p109 = scmp.eq.s32.totalorder %s21, 0
      %p110 = por %p108, %p109
      %p111 = scmp.ne.s32.totalorder %s99, %s100
      %p112 = scmp.eq.s32.totalorder %s22, 2
      %p113 = por %p111, %p112
      %p115 = scmp.ne.s32.totalorder %s100, %s114
      %p116 = scmp.eq.s32.totalorder %s22, 0
      %p117 = por %p115, %p116
      %s119 = sadd.s32 %s118, 1
      %p122 = scmp.eq.s32.totalorder %s16, 2
      %p123 = scmp.ne.s32.totalorder %s118, %s120
      %p124 = scmp.eq.s32.totalorder %s16, 0
      %p125 = por %p123, %p124
      %p126 = scmp.ne.s32.totalorder %s118, %s120
      %p127 = scmp.eq.s32.totalorder %s21, 2
      %p128 = por %p126, %p127
      %p129 = scmp.ne.s32.totalorder %s120, %s121
      %p130 = scmp.eq.s32.totalorder %s21, 0
      %p131 = por %p129, %p130
      %p132 = scmp.ne.s32.totalorder %s120, %s121
      %p133 = scmp.eq.s32.totalorder %s22, 2
      %p134 = por %p132, %p133
      %p136 = scmp.ne.s32.totalorder %s121, %s135
      %p137 = scmp.eq.s32.totalorder %s22, 0
      %p138 = por %p136, %p137
      %s140 = sadd.s32 %s139, 1
      %p143 = scmp.eq.s32.totalorder %s16, 2
      %p144 = scmp.ne.s32.totalorder %s139, %s141
      %p145 = scmp.eq.s32.totalorder %s16, 0
      %p146 = por %p144, %p145
      %p147 = scmp.ne.s32.totalorder %s139, %s141
      %p148 = scmp.eq.s32.totalorder %s21, 2
      %p149 = por %p147, %p148
      %p150 = scmp.ne.s32.totalorder %s141, %s142
      %p151 = scmp.eq.s32.totalorder %s21, 0
      %p152 = por %p150, %p151
      %p153 = scmp.ne.s32.totalorder %s141, %s142
      %p154 = scmp.eq.s32.totalorder %s22, 2
      %p155 = por %p153, %p154
      %p157 = scmp.ne.s32.totalorder %s142, %s156
      %p158 = scmp.eq.s32.totalorder %s22, 0
      %p159 = por %p157, %p158
      %s161 = sadd.s32 %s160, 1
      %p164 = scmp.eq.s32.totalorder %s16, 2
      %p165 = scmp.ne.s32.totalorder %s160, %s162
      %p166 = scmp.eq.s32.totalorder %s16, 0
      %p167 = por %p165, %p166
      %p168 = scmp.ne.s32.totalorder %s160, %s162
      %p169 = scmp.eq.s32.totalorder %s21, 2
      %p170 = por %p168, %p169
      %p171 = scmp.ne.s32.totalorder %s162, %s163
      %p172 = scmp.eq.s32.totalorder %s21, 0
      %p173 = por %p171, %p172
      %p174 = scmp.ne.s32.totalorder %s162, %s163
      %p175 = scmp.eq.s32.totalorder %s22, 2
      %p176 = por %p174, %p175
      %p178 = scmp.ne.s32.totalorder %s163, %s177
      %p179 = scmp.eq.s32.totalorder %s22, 0
      %p180 = por %p178, %p179
      %s182 = sadd.s32 %s181, 1
      %p185 = scmp.eq.s32.totalorder %s16, 2
      %p186 = scmp.ne.s32.totalorder %s181, %s183
      %p187 = scmp.eq.s32.totalorder %s16, 0
      %p188 = por %p186, %p187
      %p189 = scmp.ne.s32.totalorder %s181, %s183
      %p190 = scmp.eq.s32.totalorder %s21, 2
      %p191 = por %p189, %p190
      %p192 = scmp.ne.s32.totalorder %s183, %s184
      %p193 = scmp.eq.s32.totalorder %s21, 0
      %p194 = por %p192, %p193
      %p195 = scmp.ne.s32.totalorder %s183, %s184
      %p196 = scmp.eq.s32.totalorder %s22, 2
      %p197 = por %p195, %p196
      %p199 = scmp.ne.s32.totalorder %s184, %s198
      %p200 = scmp.eq.s32.totalorder %s22, 0
      %p201 = por %p199, %p200
      %s203 = sadd.s32 %s202, 1
      %p206 = scmp.eq.s32.totalorder %s16, 2
      %p207 = scmp.ne.s32.totalorder %s202, %s204
      %p208 = scmp.eq.s32.totalorder %s16, 0
      %p209 = por %p207, %p208
      %p210 = scmp.ne.s32.totalorder %s202, %s204
      %p211 = scmp.eq.s32.totalorder %s21, 2
      %p212 = por %p210, %p211
      %p213 = scmp.ne.s32.totalorder %s204, %s205
      %p214 = scmp.eq.s32.totalorder %s21, 0
      %p215 = por %p213, %p214
      %p216 = scmp.ne.s32.totalorder %s204, %s205
      %p217 = scmp.eq.s32.totalorder %s22, 2
      %p218 = por %p216, %p217
      %p220 = scmp.ne.s32.totalorder %s205, %s219
      %p221 = scmp.eq.s32.totalorder %s22, 0
      %p222 = por %p220, %p221
      %s224 = sadd.s32 %s223, 1
      %p227 = scmp.eq.s32.totalorder %s16, 2
      %p228 = scmp.ne.s32.totalorder %s223, %s225
      %p229 = scmp.eq.s32.totalorder %s16, 0
      %p230 = por %p228, %p229
      %p231 = scmp.ne.s32.totalorder %s223, %s225
      %p232 = scmp.eq.s32.totalorder %s21, 2
      %p233 = por %p231, %p232
      %p234 = scmp.ne.s32.totalorder %s225, %s226
      %p235 = scmp.eq.s32.totalorder %s21, 0
      %p236 = por %p234, %p235
      %p237 = scmp.ne.s32.totalorder %s225, %s226
      %p238 = scmp.eq.s32.totalorder %s22, 2
      %p239 = por %p237, %p238
      %p241 = scmp.ne.s32.totalorder %s226, %s240
      %p242 = scmp.eq.s32.totalorder %s22, 0
      %p243 = por %p241, %p242
      %p244 = scmp.le.s32.totalorder 1, %s16
      %p245 = scmp.lt.s32.totalorder %s16, 4
      %p246 = pnand %p244, %p245
      %p247 = pneg %p246
      // Predicated region
      $region9: #{vnagg_gin.1} parent=5 // pred_check
        _
      $region10: #{vnagg_gin.1} parent=5 // pred_check_branch
        %249 = sbr.rel (%p246) target = $region12
      $region11: #{vnagg_gin.1} parent=5 // pred_region
        %s250 = ssub.s32 %s16, 1
        // Predicated region
        $region13: #{vnagg_gin.1} parent=11 // pred_check
          %p251 = pneg %p89
        $region14: #{vnagg_gin.1} parent=11 // pred_check_branch
          %253 = sbr.rel (%p251) target = $region16
        $region15: #{vnagg_gin.1} parent=11 // pred_region
          _
        $region16: #{vnagg_gin.1} parent=11 // pred_fallthru
          _
        // Predicated region
        $region17: #{vnagg_gin.1} parent=11 // pred_check
          %p254 = pneg %p110
        $region18: #{vnagg_gin.1} parent=11 // pred_check_branch
          %256 = sbr.rel (%p254) target = $region20
        $region19: #{vnagg_gin.1} parent=11 // pred_region
          _
        $region20: #{vnagg_gin.1} parent=11 // pred_fallthru
          _
        // Predicated region
        $region21: #{vnagg_gin.1} parent=11 // pred_check
          %p257 = pneg %p131
        $region22: #{vnagg_gin.1} parent=11 // pred_check_branch
          %259 = sbr.rel (%p257) target = $region24
        $region23: #{vnagg_gin.1} parent=11 // pred_region
          _
        $region24: #{vnagg_gin.1} parent=11 // pred_fallthru
          _
        // Predicated region
        $region25: #{vnagg_gin.1} parent=11 // pred_check
          %p260 = pneg %p152
        $region26: #{vnagg_gin.1} parent=11 // pred_check_branch
          %262 = sbr.rel (%p260) target = $region28
        $region27: #{vnagg_gin.1} parent=11 // pred_region
          _
        $region28: #{vnagg_gin.1} parent=11 // pred_fallthru
          _
        // Predicated region
        $region29: #{vnagg_gin.1} parent=11 // pred_check
          %p263 = pneg %p173
        $region30: #{vnagg_gin.1} parent=11 // pred_check_branch
          %265 = sbr.rel (%p263) target = $region32
        $region31: #{vnagg_gin.1} parent=11 // pred_region
          _
        $region32: #{vnagg_gin.1} parent=11 // pred_fallthru
          _
        // Predicated region
        $region33: #{vnagg_gin.1} parent=11 // pred_check
          %p266 = pneg %p194
        $region34: #{vnagg_gin.1} parent=11 // pred_check_branch
          %268 = sbr.rel (%p266) target = $region36
        $region35: #{vnagg_gin.1} parent=11 // pred_region
          _
        $region36: #{vnagg_gin.1} parent=11 // pred_fallthru
          _
        // Predicated region
        $region37: #{vnagg_gin.1} parent=11 // pred_check
          %p269 = pneg %p215
        $region38: #{vnagg_gin.1} parent=11 // pred_check_branch
          %271 = sbr.rel (%p269) target = $region40
        $region39: #{vnagg_gin.1} parent=11 // pred_region
          _
        $region40: #{vnagg_gin.1} parent=11 // pred_fallthru
          _
      $region12: #{vnagg_gin.1} parent=5 // pred_fallthru
        _
      %p272 = scmp.lt.s32.totalorder %s16, 3
      // Predicated region
      $region41: #{vnagg_gin.1} parent=5 // pred_check
        %p273 = pneg %p272
      $region42: #{vnagg_gin.1} parent=5 // pred_check_branch
        %275 = sbr.rel (%p273) target = $region44
      $region43: #{vnagg_gin.1} parent=5 // pred_region
        // Predicated region
        $region45: #{vnagg_gin.1} parent=43 // pred_check
          %p276 = pneg %p36
        $region46: #{vnagg_gin.1} parent=43 // pred_check_branch
          %278 = sbr.rel (%p276) target = $region48
        $region47: #{vnagg_gin.1} parent=43 // pred_region
          %s279 = smul.u32 4, %s16
          %s280 = ssub.s32 10, %s279
          %p281 = scmp.lt.s32.totalorder %s280, 4
          %s282 = scalar_select %p281, %s280, 4
          %p283 = scmp.lt.s32.totalorder %s279, 9
          %s284 = scalar_select %p283, %s279, 9
          %s285 = scalar_lea.vmem %s0, %s284
          %s286 = smul.u32 4, %s16
          %s287 = ssub.s32 10, %s286
          %p288 = scmp.lt.s32.totalorder %s287, 4
          %s289 = scalar_select %p288, %s287, 4
        $region48: #{vnagg_gin.1} parent=43 // pred_fallthru
          _
        // Predicated region
        $region49: #{vnagg_gin.1} parent=43 // pred_check
          %p290 = pneg %p62
        $region50: #{vnagg_gin.1} parent=43 // pred_check_branch
          %292 = sbr.rel (%p290) target = $region52
        $region51: #{vnagg_gin.1} parent=43 // pred_region
          %s293 = smul.u32 64, %s16
          %s294 = ssub.s32 150, %s293
          %p295 = scmp.lt.s32.totalorder %s294, 64
          %s296 = scalar_select %p295, %s294, 64
          %s297 = smul.u32 8, %s296
          %p298 = scmp.lt.s32.totalorder %s293, 149
          %s299 = scalar_select %p298, %s293, 149
          %s300 = smul.addr %s299, 8
          %s301 = scalar_lea.vmem %s1, %s300
          %s302 = smul.u32 64, %s16
          %s303 = ssub.s32 150, %s302
          %p304 = scmp.lt.s32.totalorder %s303, 64
          %s305 = scalar_select %p304, %s303, 64
          %s306 = smul.u32 8, %s305
        $region52: #{vnagg_gin.1} parent=43 // pred_fallthru
          _
      $region44: #{vnagg_gin.1} parent=5 // pred_fallthru
        _
      %p307 = scmp.le.s32.totalorder 1, %s16
      %p308 = scmp.lt.s32.totalorder %s16, 4
      %p309 = pnand %p307, %p308
      %p310 = pneg %p309
      // Predicated region
      $region53: #{vnagg_gin.1} parent=5 // pred_check
        _
      $region54: #{vnagg_gin.1} parent=5 // pred_check_branch
        %312 = sbr.rel (%p309) target = $region56
      $region55: #{vnagg_gin.1} parent=5 // pred_region
        %s313 = ssub.s32 %s16, 1
        %s314 = smul.u32 4, %s21
        %s315 = ssub.s32 10, %s314
        %p316 = scmp.lt.s32.totalorder %s315, 4
        %s317 = scalar_select %p316, %s315, 4
        %p318 = scmp.lt.s32.totalorder %s314, 9
        %s319 = scalar_select %p318, %s314, 9
        %s320 = scalar_lea.vmem %s0, %s319
        %p321 = pneg %p42
        %p322 = pneg %p39
        %s323 = smul.u32 64, %s21
        %s324 = ssub.s32 150, %s323
        %p325 = scmp.lt.s32.totalorder %s324, 64
        %s326 = scalar_select %p325, %s324, 64
        %s327 = smul.u32 8, %s326
        %p328 = scmp.lt.s32.totalorder %s323, 149
        %s329 = scalar_select %p328, %s323, 149
        %s330 = smul.addr %s329, 8
        %s331 = scalar_lea.vmem %s1, %s330
        %p332 = pneg %p68
        %p333 = pneg %p65
        %p334 = pneg %p89
        %p335 = pneg %p86
        %p336 = pneg %p110
        %p337 = pneg %p107
        %p338 = pneg %p131
        %p339 = pneg %p128
        %p340 = pneg %p152
        %p341 = pneg %p149
        %p342 = pneg %p173
        %p343 = pneg %p170
        %p344 = pneg %p194
        %p345 = pneg %p191
        %p346 = pneg %p215
        %p347 = pneg %p212
        %p348 = pneg %p236
        %p349 = pneg %p233
        %s350 = smul.u32 4, %s21
        %s351 = ssub.s32 10, %s350
        %p352 = scmp.lt.s32.totalorder %s351, 4
        %s353 = scalar_select %p352, %s351, 4
        %p354 = scmp.lt.s32.totalorder %s350, 9
        %s355 = scalar_select %p354, %s350, 9
        %s356 = scalar_lea.vmem %s0, %s355
        %s357 = smul.u32 4, %s21
        %s358 = ssub.s32 10, %s357
        %p359 = scmp.lt.s32.totalorder %s358, 4
        %s360 = scalar_select %p359, %s358, 4
        %s361 = smul.u32 64, %s21
        %s362 = ssub.s32 150, %s361
        %p363 = scmp.lt.s32.totalorder %s362, 64
        %s364 = scalar_select %p363, %s362, 64
        %s365 = smul.u32 8, %s364
        %p366 = scmp.lt.s32.totalorder %s361, 149
        %s367 = scalar_select %p366, %s361, 149
        %s368 = smul.addr %s367, 8
        %s369 = scalar_lea.vmem %s1, %s368
        %s370 = smul.u32 64, %s21
        %s371 = ssub.s32 150, %s370
        %p372 = scmp.lt.s32.totalorder %s371, 64
        %s373 = scalar_select %p372, %s371, 64
        %s374 = smul.u32 8, %s373
        %p375 = scmp.eq.s32.totalorder %s21, 0
        // Predicated region
        $region57: #{vnagg_gin.1} parent=55 // pred_check
          %p376 = pneg %p375
        $region58: #{vnagg_gin.1} parent=55 // pred_check_branch
          %378 = sbr.rel (%p376) target = $region60
        $region59: #{vnagg_gin.1} parent=55 // pred_region
          %vm379 = vcmask 261120
          %380 = vst.msk [vmem:[#allocation2] sm:$0xff] %vm379, 0.0
          %381 = vst.msk [vmem:[#allocation2 + $0x8] sm:$0xff] %vm379, 0.0
        $region60: #{vnagg_gin.1} parent=55 // pred_fallthru
          _
        %v382 = vld [vmem:[%s369] sm:$0xff]
        %v383 = vld [vmem:[%s369 + $0x8] sm:$0xff]
        %v384 = vld [vmem:[%s369 + $0x10] sm:$0xff]
        %v385 = vld [vmem:[%s369 + $0x18] sm:$0xff]
        %v386 = vld [vmem:[%s369 + $0x20] sm:$0xff]
        %v387 = vld [vmem:[%s369 + $0x28] sm:$0xff]
        %v388 = vld [vmem:[%s369 + $0x30] sm:$0xff]
        %v389 = vld [vmem:[%s369 + $0x38] sm:$0xff]
        %v390 = vld [vmem:[%s369 + $0x40] sm:$0xff]
        %v391 = vld [vmem:[%s369 + $0x48] sm:$0xff]
        %v392 = vld [vmem:[%s369 + $0x50] sm:$0xff]
        %v393 = vld [vmem:[%s369 + $0x58] sm:$0xff]
        %v394 = vld [vmem:[%s369 + $0x60] sm:$0xff]
        %v395 = vld [vmem:[%s369 + $0x68] sm:$0xff]
        %v396 = vld [vmem:[%s369 + $0x70] sm:$0xff]
        %v397 = vld [vmem:[%s369 + $0x78] sm:$0xff]
        %v398 = vld [vmem:[%s369 + $0x80] sm:$0xff]
        %v399 = vld [vmem:[%s369 + $0x88] sm:$0xff]
        %v400 = vld [vmem:[%s369 + $0x90] sm:$0xff]
        %v401 = vld [vmem:[%s369 + $0x98] sm:$0xff]
        %v402 = vld [vmem:[%s369 + $0xa0] sm:$0xff]
        %v403 = vld [vmem:[%s369 + $0xa8] sm:$0xff]
        %v404 = vld [vmem:[%s369 + $0xb0] sm:$0xff]
        %v405 = vld [vmem:[%s369 + $0xb8] sm:$0xff]
        %v406 = vld [vmem:[%s369 + $0xc0] sm:$0xff]
        %v407 = vld [vmem:[%s369 + $0xc8] sm:$0xff]
        %v408 = vld [vmem:[%s369 + $0xd0] sm:$0xff]
        %v409 = vld [vmem:[%s369 + $0xd8] sm:$0xff]
        %v410 = vld [vmem:[%s369 + $0xe0] sm:$0xff]
        %v411 = vld [vmem:[%s369 + $0xe8] sm:$0xff]
        %v412 = vld [vmem:[%s369 + $0xf0] sm:$0xff]
        %v413 = vld [vmem:[%s369 + $0xf8] sm:$0xff]
        %v414 = vld [vmem:[%s369 + $0x100] sm:$0xff]
        %v415 = vld [vmem:[%s369 + $0x108] sm:$0xff]
        %v416 = vld [vmem:[%s369 + $0x110] sm:$0xff]
        %v417 = vld [vmem:[%s369 + $0x118] sm:$0xff]
        %v418 = vld [vmem:[%s369 + $0x120] sm:$0xff]
        %v419 = vld [vmem:[%s369 + $0x128] sm:$0xff]
        %v420 = vld [vmem:[%s369 + $0x130] sm:$0xff]
        %v421 = vld [vmem:[%s369 + $0x138] sm:$0xff]
        %v422 = vld [vmem:[%s369 + $0x140] sm:$0xff]
        %v423 = vld [vmem:[%s369 + $0x148] sm:$0xff]
        %v424 = vld [vmem:[%s369 + $0x150] sm:$0xff]
        %v425 = vld [vmem:[%s369 + $0x158] sm:$0xff]
        %v426 = vld [vmem:[%s369 + $0x160] sm:$0xff]
        %v427 = vld [vmem:[%s369 + $0x168] sm:$0xff]
        %v428 = vld [vmem:[%s369 + $0x170] sm:$0xff]
        %v429 = vld [vmem:[%s369 + $0x178] sm:$0xff]
        %v430 = vld [vmem:[%s369 + $0x180] sm:$0xff]
        %v431 = vld [vmem:[%s369 + $0x188] sm:$0xff]
        %v432 = vld [vmem:[%s369 + $0x190] sm:$0xff]
        %v433 = vld [vmem:[%s369 + $0x198] sm:$0xff]
        %v434 = vld [vmem:[%s369 + $0x1a0] sm:$0xff]
        %v435 = vld [vmem:[%s369 + $0x1a8] sm:$0xff]
        %v436 = vld [vmem:[%s369 + $0x1b0] sm:$0xff]
        %v437 = vld [vmem:[%s369 + $0x1b8] sm:$0xff]
        %v438 = vld [vmem:[%s369 + $0x1c0] sm:$0xff]
        %v439 = vld [vmem:[%s369 + $0x1c8] sm:$0xff]
        %v440 = vld [vmem:[%s369 + $0x1d0] sm:$0xff]
        %v441 = vld [vmem:[%s369 + $0x1d8] sm:$0xff]
        %v442 = vld [vmem:[%s369 + $0x1e0] sm:$0xff]
        %v443 = vld [vmem:[%s369 + $0x1e8] sm:$0xff]
        %v444 = vld [vmem:[%s369 + $0x1f0] sm:$0xff]
        %v445 = vld [vmem:[%s369 + $0x1f8] sm:$0xff]
        %s446 = smul.u32 %s21, 512
        %v447 = vlaneseq
        %v448 = vshrl.u32 %v447, 7
        %v449 = vadd.s32 %v448, 8
        %v450 = vadd.s32 %v448, 16
        %v451 = vadd.s32 %v448, 24
        %v452 = vadd.s32 %v448, 32
        %v453 = vadd.s32 %v448, 40
        %v454 = vadd.s32 %v448, 48
        %v455 = vadd.s32 %v448, 56
        %v456 = vadd.s32 %v448, 64
        %v457 = vadd.s32 %v448, 72
        %v458 = vadd.s32 %v448, 80
        %v459 = vadd.s32 %v448, 88
        %v460 = vadd.s32 %v448, 96
        %v461 = vadd.s32 %v448, 104
        %v462 = vadd.s32 %v448, 112
        %v463 = vadd.s32 %v448, 120
        %v464 = vadd.s32 %v448, 128
        %v465 = vadd.s32 %v448, 136
        %v466 = vadd.s32 %v448, 144
        %v467 = vadd.s32 %v448, 152
        %v468 = vadd.s32 %v448, 160
        %v469 = vadd.s32 %v448, 168
        %v470 = vadd.s32 %v448, 176
        %v471 = vadd.s32 %v448, 184
        %v472 = vadd.s32 %v448, 192
        %v473 = vadd.s32 %v448, 200
        %v474 = vadd.s32 %v448, 208
        %v475 = vadd.s32 %v448, 216
        %v476 = vadd.s32 %v448, 224
        %v477 = vadd.s32 %v448, 232
        %v478 = vadd.s32 %v448, 240
        %v479 = vadd.s32 %v448, 248
        %v480 = vadd.s32 %v448, 256
        %v481 = vadd.s32 %v448, 264
        %v482 = vadd.s32 %v448, 272
        %v483 = vadd.s32 %v448, 280
        %v484 = vadd.s32 %v448, 288
        %v485 = vadd.s32 %v448, 296
        %v486 = vadd.s32 %v448, 304
        %v487 = vadd.s32 %v448, 312
        %v488 = vadd.s32 %v448, 320
        %v489 = vadd.s32 %v448, 328
        %v490 = vadd.s32 %v448, 336
        %v491 = vadd.s32 %v448, 344
        %v492 = vadd.s32 %v448, 352
        %v493 = vadd.s32 %v448, 360
        %v494 = vadd.s32 %v448, 368
        %v495 = vadd.s32 %v448, 376
        %v496 = vadd.s32 %v448, 384
        %v497 = vadd.s32 %v448, 392
        %v498 = vadd.s32 %v448, 400
        %v499 = vadd.s32 %v448, 408
        %v500 = vadd.s32 %v448, 416
        %v501 = vadd.s32 %v448, 424
        %v502 = vadd.s32 %v448, 432
        %v503 = vadd.s32 %v448, 440
        %v504 = vadd.s32 %v448, 448
        %v505 = vadd.s32 %v448, 456
        %v506 = vadd.s32 %v448, 464
        %v507 = vadd.s32 %v448, 472
        %v508 = vadd.s32 %v448, 480
        %v509 = vadd.s32 %v448, 488
        %v510 = vadd.s32 %v448, 496
        %v511 = vadd.s32 %v448, 504
        %v512 = vstv %s446
        %v513 = vadd.s32 %v512, %v448
        %v514 = vadd.s32 %v512, %v449
        %v515 = vadd.s32 %v512, %v450
        %v516 = vadd.s32 %v512, %v451
        %v517 = vadd.s32 %v512, %v452
        %v518 = vadd.s32 %v512, %v453
        %v519 = vadd.s32 %v512, %v454
        %v520 = vadd.s32 %v512, %v455
        %v521 = vadd.s32 %v512, %v456
        %v522 = vadd.s32 %v512, %v457
        %v523 = vadd.s32 %v512, %v458
        %v524 = vadd.s32 %v512, %v459
        %v525 = vadd.s32 %v512, %v460
        %v526 = vadd.s32 %v512, %v461
        %v527 = vadd.s32 %v512, %v462
        %v528 = vadd.s32 %v512, %v463
        %v529 = vadd.s32 %v512, %v464
        %v530 = vadd.s32 %v512, %v465
        %v531 = vadd.s32 %v512, %v466
        %v532 = vadd.s32 %v512, %v467
        %v533 = vadd.s32 %v512, %v468
        %v534 = vadd.s32 %v512, %v469
        %v535 = vadd.s32 %v512, %v470
        %v536 = vadd.s32 %v512, %v471
        %v537 = vadd.s32 %v512, %v472
        %v538 = vadd.s32 %v512, %v473
        %v539 = vadd.s32 %v512, %v474
        %v540 = vadd.s32 %v512, %v475
        %v541 = vadd.s32 %v512, %v476
        %v542 = vadd.s32 %v512, %v477
        %v543 = vadd.s32 %v512, %v478
        %v544 = vadd.s32 %v512, %v479
        %v545 = vadd.s32 %v512, %v480
        %v546 = vadd.s32 %v512, %v481
        %v547 = vadd.s32 %v512, %v482
        %v548 = vadd.s32 %v512, %v483
        %v549 = vadd.s32 %v512, %v484
        %v550 = vadd.s32 %v512, %v485
        %v551 = vadd.s32 %v512, %v486
        %v552 = vadd.s32 %v512, %v487
        %v553 = vadd.s32 %v512, %v488
        %v554 = vadd.s32 %v512, %v489
        %v555 = vadd.s32 %v512, %v490
        %v556 = vadd.s32 %v512, %v491
        %v557 = vadd.s32 %v512, %v492
        %v558 = vadd.s32 %v512, %v493
        %v559 = vadd.s32 %v512, %v494
        %v560 = vadd.s32 %v512, %v495
        %v561 = vadd.s32 %v512, %v496
        %v562 = vadd.s32 %v512, %v497
        %v563 = vadd.s32 %v512, %v498
        %v564 = vadd.s32 %v512, %v499
        %v565 = vadd.s32 %v512, %v500
        %v566 = vadd.s32 %v512, %v501
        %v567 = vadd.s32 %v512, %v502
        %v568 = vadd.s32 %v512, %v503
        %v569 = vadd.s32 %v512, %v504
        %v570 = vadd.s32 %v512, %v505
        %v571 = vadd.s32 %v512, %v506
        %v572 = vadd.s32 %v512, %v507
        %v573 = vadd.s32 %v512, %v508
        %v574 = vadd.s32 %v512, %v509
        %v575 = vadd.s32 %v512, %v510
        %v576 = vadd.s32 %v512, %v511
        %vm577 = vcmp.lt.s32.totalorder %v513, 1200
        %vm578 = vcmp.lt.s32.totalorder %v514, 1200
        %vm579 = vcmp.lt.s32.totalorder %v515, 1200
        %vm580 = vcmp.lt.s32.totalorder %v516, 1200
        %vm581 = vcmp.lt.s32.totalorder %v517, 1200
        %vm582 = vcmp.lt.s32.totalorder %v518, 1200
        %vm583 = vcmp.lt.s32.totalorder %v519, 1200
        %vm584 = vcmp.lt.s32.totalorder %v520, 1200
        %vm585 = vcmp.lt.s32.totalorder %v521, 1200
        %vm586 = vcmp.lt.s32.totalorder %v522, 1200
        %vm587 = vcmp.lt.s32.totalorder %v523, 1200
        %vm588 = vcmp.lt.s32.totalorder %v524, 1200
        %vm589 = vcmp.lt.s32.totalorder %v525, 1200
        %vm590 = vcmp.lt.s32.totalorder %v526, 1200
        %vm591 = vcmp.lt.s32.totalorder %v527, 1200
        %vm592 = vcmp.lt.s32.totalorder %v528, 1200
        %vm593 = vcmp.lt.s32.totalorder %v529, 1200
        %vm594 = vcmp.lt.s32.totalorder %v530, 1200
        %vm595 = vcmp.lt.s32.totalorder %v531, 1200
        %vm596 = vcmp.lt.s32.totalorder %v532, 1200
        %vm597 = vcmp.lt.s32.totalorder %v533, 1200
        %vm598 = vcmp.lt.s32.totalorder %v534, 1200
        %vm599 = vcmp.lt.s32.totalorder %v535, 1200
        %vm600 = vcmp.lt.s32.totalorder %v536, 1200
        %vm601 = vcmp.lt.s32.totalorder %v537, 1200
        %vm602 = vcmp.lt.s32.totalorder %v538, 1200
        %vm603 = vcmp.lt.s32.totalorder %v539, 1200
        %vm604 = vcmp.lt.s32.totalorder %v540, 1200
        %vm605 = vcmp.lt.s32.totalorder %v541, 1200
        %vm606 = vcmp.lt.s32.totalorder %v542, 1200
        %vm607 = vcmp.lt.s32.totalorder %v543, 1200
        %vm608 = vcmp.lt.s32.totalorder %v544, 1200
        %vm609 = vcmp.lt.s32.totalorder %v545, 1200
        %vm610 = vcmp.lt.s32.totalorder %v546, 1200
        %vm611 = vcmp.lt.s32.totalorder %v547, 1200
        %vm612 = vcmp.lt.s32.totalorder %v548, 1200
        %vm613 = vcmp.lt.s32.totalorder %v549, 1200
        %vm614 = vcmp.lt.s32.totalorder %v550, 1200
        %vm615 = vcmp.lt.s32.totalorder %v551, 1200
        %vm616 = vcmp.lt.s32.totalorder %v552, 1200
        %vm617 = vcmp.lt.s32.totalorder %v553, 1200
        %vm618 = vcmp.lt.s32.totalorder %v554, 1200
        %vm619 = vcmp.lt.s32.totalorder %v555, 1200
        %vm620 = vcmp.lt.s32.totalorder %v556, 1200
        %vm621 = vcmp.lt.s32.totalorder %v557, 1200
        %vm622 = vcmp.lt.s32.totalorder %v558, 1200
        %vm623 = vcmp.lt.s32.totalorder %v559, 1200
        %vm624 = vcmp.lt.s32.totalorder %v560, 1200
        %vm625 = vcmp.lt.s32.totalorder %v561, 1200
        %vm626 = vcmp.lt.s32.totalorder %v562, 1200
        %vm627 = vcmp.lt.s32.totalorder %v563, 1200
        %vm628 = vcmp.lt.s32.totalorder %v564, 1200
        %vm629 = vcmp.lt.s32.totalorder %v565, 1200
        %vm630 = vcmp.lt.s32.totalorder %v566, 1200
        %vm631 = vcmp.lt.s32.totalorder %v567, 1200
        %vm632 = vcmp.lt.s32.totalorder %v568, 1200
        %vm633 = vcmp.lt.s32.totalorder %v569, 1200
        %vm634 = vcmp.lt.s32.totalorder %v570, 1200
        %vm635 = vcmp.lt.s32.totalorder %v571, 1200
        %vm636 = vcmp.lt.s32.totalorder %v572, 1200
        %vm637 = vcmp.lt.s32.totalorder %v573, 1200
        %vm638 = vcmp.lt.s32.totalorder %v574, 1200
        %vm639 = vcmp.lt.s32.totalorder %v575, 1200
        %vm640 = vcmp.lt.s32.totalorder %v576, 1200
        %v641 = vsel %vm577, 1, 0
        %v642 = vsel %vm578, 1, 0
        %v643 = vsel %vm579, 1, 0
        %v644 = vsel %vm580, 1, 0
        %v645 = vsel %vm581, 1, 0
        %v646 = vsel %vm582, 1, 0
        %v647 = vsel %vm583, 1, 0
        %v648 = vsel %vm584, 1, 0
        %v649 = vsel %vm585, 1, 0
        %v650 = vsel %vm586, 1, 0
        %v651 = vsel %vm587, 1, 0
        %v652 = vsel %vm588, 1, 0
        %v653 = vsel %vm589, 1, 0
        %v654 = vsel %vm590, 1, 0
        %v655 = vsel %vm591, 1, 0
        %v656 = vsel %vm592, 1, 0
        %v657 = vsel %vm593, 1, 0
        %v658 = vsel %vm594, 1, 0
        %v659 = vsel %vm595, 1, 0
        %v660 = vsel %vm596, 1, 0
        %v661 = vsel %vm597, 1, 0
        %v662 = vsel %vm598, 1, 0
        %v663 = vsel %vm599, 1, 0
        %v664 = vsel %vm600, 1, 0
        %v665 = vsel %vm601, 1, 0
        %v666 = vsel %vm602, 1, 0
        %v667 = vsel %vm603, 1, 0
        %v668 = vsel %vm604, 1, 0
        %v669 = vsel %vm605, 1, 0
        %v670 = vsel %vm606, 1, 0
        %v671 = vsel %vm607, 1, 0
        %v672 = vsel %vm608, 1, 0
        %v673 = vsel %vm609, 1, 0
        %v674 = vsel %vm610, 1, 0
        %v675 = vsel %vm611, 1, 0
        %v676 = vsel %vm612, 1, 0
        %v677 = vsel %vm613, 1, 0
        %v678 = vsel %vm614, 1, 0
        %v679 = vsel %vm615, 1, 0
        %v680 = vsel %vm616, 1, 0
        %v681 = vsel %vm617, 1, 0
        %v682 = vsel %vm618, 1, 0
        %v683 = vsel %vm619, 1, 0
        %v684 = vsel %vm620, 1, 0
        %v685 = vsel %vm621, 1, 0
        %v686 = vsel %vm622, 1, 0
        %v687 = vsel %vm623, 1, 0
        %v688 = vsel %vm624, 1, 0
        %v689 = vsel %vm625, 1, 0
        %v690 = vsel %vm626, 1, 0
        %v691 = vsel %vm627, 1, 0
        %v692 = vsel %vm628, 1, 0
        %v693 = vsel %vm629, 1, 0
        %v694 = vsel %vm630, 1, 0
        %v695 = vsel %vm631, 1, 0
        %v696 = vsel %vm632, 1, 0
        %v697 = vsel %vm633, 1, 0
        %v698 = vsel %vm634, 1, 0
        %v699 = vsel %vm635, 1, 0
        %v700 = vsel %vm636, 1, 0
        %v701 = vsel %vm637, 1, 0
        %v702 = vsel %vm638, 1, 0
        %v703 = vsel %vm639, 1, 0
        %v704 = vsel %vm640, 1, 0
        %vm705 = vcmp.eq.s32.totalorder %v641, 1
        %vm706 = vcmp.eq.s32.totalorder %v642, 1
        %vm707 = vcmp.eq.s32.totalorder %v643, 1
        %vm708 = vcmp.eq.s32.totalorder %v644, 1
        %vm709 = vcmp.eq.s32.totalorder %v645, 1
        %vm710 = vcmp.eq.s32.totalorder %v646, 1
        %vm711 = vcmp.eq.s32.totalorder %v647, 1
        %vm712 = vcmp.eq.s32.totalorder %v648, 1
        %vm713 = vcmp.eq.s32.totalorder %v649, 1
        %vm714 = vcmp.eq.s32.totalorder %v650, 1
        %vm715 = vcmp.eq.s32.totalorder %v651, 1
        %vm716 = vcmp.eq.s32.totalorder %v652, 1
        %vm717 = vcmp.eq.s32.totalorder %v653, 1
        %vm718 = vcmp.eq.s32.totalorder %v654, 1
        %vm719 = vcmp.eq.s32.totalorder %v655, 1
        %vm720 = vcmp.eq.s32.totalorder %v656, 1
        %vm721 = vcmp.eq.s32.totalorder %v657, 1
        %vm722 = vcmp.eq.s32.totalorder %v658, 1
        %vm723 = vcmp.eq.s32.totalorder %v659, 1
        %vm724 = vcmp.eq.s32.totalorder %v660, 1
        %vm725 = vcmp.eq.s32.totalorder %v661, 1
        %vm726 = vcmp.eq.s32.totalorder %v662, 1
        %vm727 = vcmp.eq.s32.totalorder %v663, 1
        %vm728 = vcmp.eq.s32.totalorder %v664, 1
        %vm729 = vcmp.eq.s32.totalorder %v665, 1
        %vm730 = vcmp.eq.s32.totalorder %v666, 1
        %vm731 = vcmp.eq.s32.totalorder %v667, 1
        %vm732 = vcmp.eq.s32.totalorder %v668, 1
        %vm733 = vcmp.eq.s32.totalorder %v669, 1
        %vm734 = vcmp.eq.s32.totalorder %v670, 1
        %vm735 = vcmp.eq.s32.totalorder %v671, 1
        %vm736 = vcmp.eq.s32.totalorder %v672, 1
        %vm737 = vcmp.eq.s32.totalorder %v673, 1
        %vm738 = vcmp.eq.s32.totalorder %v674, 1
        %vm739 = vcmp.eq.s32.totalorder %v675, 1
        %vm740 = vcmp.eq.s32.totalorder %v676, 1
        %vm741 = vcmp.eq.s32.totalorder %v677, 1
        %vm742 = vcmp.eq.s32.totalorder %v678, 1
        %vm743 = vcmp.eq.s32.totalorder %v679, 1
        %vm744 = vcmp.eq.s32.totalorder %v680, 1
        %vm745 = vcmp.eq.s32.totalorder %v681, 1
        %vm746 = vcmp.eq.s32.totalorder %v682, 1
        %vm747 = vcmp.eq.s32.totalorder %v683, 1
        %vm748 = vcmp.eq.s32.totalorder %v684, 1
        %vm749 = vcmp.eq.s32.totalorder %v685, 1
        %vm750 = vcmp.eq.s32.totalorder %v686, 1
        %vm751 = vcmp.eq.s32.totalorder %v687, 1
        %vm752 = vcmp.eq.s32.totalorder %v688, 1
        %vm753 = vcmp.eq.s32.totalorder %v689, 1
        %vm754 = vcmp.eq.s32.totalorder %v690, 1
        %vm755 = vcmp.eq.s32.totalorder %v691, 1
        %vm756 = vcmp.eq.s32.totalorder %v692, 1
        %vm757 = vcmp.eq.s32.totalorder %v693, 1
        %vm758 = vcmp.eq.s32.totalorder %v694, 1
        %vm759 = vcmp.eq.s32.totalorder %v695, 1
        %vm760 = vcmp.eq.s32.totalorder %v696, 1
        %vm761 = vcmp.eq.s32.totalorder %v697, 1
        %vm762 = vcmp.eq.s32.totalorder %v698, 1
        %vm763 = vcmp.eq.s32.totalorder %v699, 1
        %vm764 = vcmp.eq.s32.totalorder %v700, 1
        %vm765 = vcmp.eq.s32.totalorder %v701, 1
        %vm766 = vcmp.eq.s32.totalorder %v702, 1
        %vm767 = vcmp.eq.s32.totalorder %v703, 1
        %vm768 = vcmp.eq.s32.totalorder %v704, 1
        %v769 = vsel %vm705, %v382, 0.0
        %v770 = vsel %vm706, %v383, 0.0
        %v771 = vsel %vm707, %v384, 0.0
        %v772 = vsel %vm708, %v385, 0.0
        %v773 = vsel %vm709, %v386, 0.0
        %v774 = vsel %vm710, %v387, 0.0
        %v775 = vsel %vm711, %v388, 0.0
        %v776 = vsel %vm712, %v389, 0.0
        %v777 = vsel %vm713, %v390, 0.0
        %v778 = vsel %vm714, %v391, 0.0
        %v779 = vsel %vm715, %v392, 0.0
        %v780 = vsel %vm716, %v393, 0.0
        %v781 = vsel %vm717, %v394, 0.0
        %v782 = vsel %vm718, %v395, 0.0
        %v783 = vsel %vm719, %v396, 0.0
        %v784 = vsel %vm720, %v397, 0.0
        %v785 = vsel %vm721, %v398, 0.0
        %v786 = vsel %vm722, %v399, 0.0
        %v787 = vsel %vm723, %v400, 0.0
        %v788 = vsel %vm724, %v401, 0.0
        %v789 = vsel %vm725, %v402, 0.0
        %v790 = vsel %vm726, %v403, 0.0
        %v791 = vsel %vm727, %v404, 0.0
        %v792 = vsel %vm728, %v405, 0.0
        %v793 = vsel %vm729, %v406, 0.0
        %v794 = vsel %vm730, %v407, 0.0
        %v795 = vsel %vm731, %v408, 0.0
        %v796 = vsel %vm732, %v409, 0.0
        %v797 = vsel %vm733, %v410, 0.0
        %v798 = vsel %vm734, %v411, 0.0
        %v799 = vsel %vm735, %v412, 0.0
        %v800 = vsel %vm736, %v413, 0.0
        %v801 = vsel %vm737, %v414, 0.0
        %v802 = vsel %vm738, %v415, 0.0
        %v803 = vsel %vm739, %v416, 0.0
        %v804 = vsel %vm740, %v417, 0.0
        %v805 = vsel %vm741, %v418, 0.0
        %v806 = vsel %vm742, %v419, 0.0
        %v807 = vsel %vm743, %v420, 0.0
        %v808 = vsel %vm744, %v421, 0.0
        %v809 = vsel %vm745, %v422, 0.0
        %v810 = vsel %vm746, %v423, 0.0
        %v811 = vsel %vm747, %v424, 0.0
        %v812 = vsel %vm748, %v425, 0.0
        %v813 = vsel %vm749, %v426, 0.0
        %v814 = vsel %vm750, %v427, 0.0
        %v815 = vsel %vm751, %v428, 0.0
        %v816 = vsel %vm752, %v429, 0.0
        %v817 = vsel %vm753, %v430, 0.0
        %v818 = vsel %vm754, %v431, 0.0
        %v819 = vsel %vm755, %v432, 0.0
        %v820 = vsel %vm756, %v433, 0.0
        %v821 = vsel %vm757, %v434, 0.0
        %v822 = vsel %vm758, %v435, 0.0
        %v823 = vsel %vm759, %v436, 0.0
        %v824 = vsel %vm760, %v437, 0.0
        %v825 = vsel %vm761, %v438, 0.0
        %v826 = vsel %vm762, %v439, 0.0
        %v827 = vsel %vm763, %v440, 0.0
        %v828 = vsel %vm764, %v441, 0.0
        %v829 = vsel %vm765, %v442, 0.0
        %v830 = vsel %vm766, %v443, 0.0
        %v831 = vsel %vm767, %v444, 0.0
        %v832 = vsel %vm768, %v445, 0.0
        %v833 = vld [vmem:[%s356] sm:$0xf]
        %v834 = vperm.slane %v833, 0
        %v835 = vperm.slane %v833, 1
        %v836 = vperm.slane %v833, 2
        %v837 = vperm.slane %v833, 3
        %vm838 = vcmp.eq.s32.totalorder %v834, %v448
        %vm839 = vcmp.eq.s32.totalorder %v835, %v448
        %vm840 = vcmp.eq.s32.totalorder %v836, %v448
        %vm841 = vcmp.eq.s32.totalorder %v837, %v448
        %vm842 = vcmp.eq.s32.totalorder %v834, %v449
        %vm843 = vcmp.eq.s32.totalorder %v835, %v449
        %vm844 = vcmp.eq.s32.totalorder %v836, %v449
        %vm845 = vcmp.eq.s32.totalorder %v837, %v449
        %v846 = vsel %vm838, 1, 0
        %v847 = vsel %vm839, 1, 0
        %v848 = vsel %vm840, 1, 0
        %v849 = vsel %vm841, 1, 0
        %v850 = vsel %vm842, 1, 0
        %v851 = vsel %vm843, 1, 0
        %v852 = vsel %vm844, 1, 0
        %v853 = vsel %vm845, 1, 0
        %v854 = vcvt.s32.f32 %v846
        %v855 = vcvt.s32.f32 %v847
        %v856 = vcvt.s32.f32 %v848
        %v857 = vcvt.s32.f32 %v849
        %v858 = vcvt.s32.f32 %v850
        %v859 = vcvt.s32.f32 %v851
        %v860 = vcvt.s32.f32 %v852
        %v861 = vcvt.s32.f32 %v853
        %v862 = vpack.c.bf16 %v858, %v854
        %v863 = vpack.c.bf16 %v859, %v855
        %v864 = vpack.c.bf16 %v860, %v856
        %v865 = vpack.c.bf16 %v861, %v857
        %v866 = vld [vmem:[#allocation2] sm:$0xff]
        %v867 = vld [vmem:[#allocation2 + $0x8] sm:$0xff]
        %v868 = vpack.c.bf16 %v770, %v769
        %v869 = vpack.c.bf16 %v772, %v771
        %v870 = vpack.c.bf16 %v774, %v773
        %v871 = vpack.c.bf16 %v776, %v775
        %v872 = vpack.c.bf16 %v778, %v777
        %v873 = vpack.c.bf16 %v780, %v779
        %v874 = vpack.c.bf16 %v782, %v781
        %v875 = vpack.c.bf16 %v784, %v783
        %v876 = vpack.c.bf16 %v786, %v785
        %v877 = vpack.c.bf16 %v788, %v787
        %v878 = vpack.c.bf16 %v790, %v789
        %v879 = vpack.c.bf16 %v792, %v791
        %v880 = vpack.c.bf16 %v794, %v793
        %v881 = vpack.c.bf16 %v796, %v795
        %v882 = vpack.c.bf16 %v798, %v797
        %v883 = vpack.c.bf16 %v800, %v799
        %v884 = vpack.c.bf16 %v802, %v801
        %v885 = vpack.c.bf16 %v804, %v803
        %v886 = vpack.c.bf16 %v806, %v805
        %v887 = vpack.c.bf16 %v808, %v807
        %v888 = vpack.c.bf16 %v810, %v809
        %v889 = vpack.c.bf16 %v812, %v811
        %v890 = vpack.c.bf16 %v814, %v813
        %v891 = vpack.c.bf16 %v816, %v815
        %v892 = vpack.c.bf16 %v818, %v817
        %v893 = vpack.c.bf16 %v820, %v819
        %v894 = vpack.c.bf16 %v822, %v821
        %v895 = vpack.c.bf16 %v824, %v823
        %v896 = vpack.c.bf16 %v826, %v825
        %v897 = vpack.c.bf16 %v828, %v827
        %v898 = vpack.c.bf16 %v830, %v829
        %v899 = vpack.c.bf16 %v832, %v831
        %900 = vmatpush.bf16.msra.mxu0 %v875
        %901 = vmatpush.bf16.msra.mxu0 %v874
        %902 = vmatpush.bf16.msra.mxu0 %v873
        %903 = vmatpush.bf16.msra.mxu0 %v872
        %904 = vmatpush.bf16.msra.mxu0 %v871
        %905 = vmatpush.bf16.msra.mxu0 %v870
        %906 = vmatpush.bf16.msra.mxu0 %v869
        %907 = vmatpush.bf16.msra.mxu0 %v868
        %908 = vmatmul.bf16.gmra.mxu0 %v862
        %v909 = vpop.f32.mrf.mxu0
        %v910 = vadd.f32 0.0, %v909
        %v911 = vpop.f32.mrf.mxu0
        %v912 = vadd.f32 0.0, %v911
        %913 = vdwg.mxu0
        %914 = vmatpush.bf16.msra.mxu0 %v883
        %915 = vmatpush.bf16.msra.mxu0 %v882
        %916 = vmatpush.bf16.msra.mxu0 %v881
        %917 = vmatpush.bf16.msra.mxu0 %v880
        %918 = vmatpush.bf16.msra.mxu0 %v879
        %919 = vmatpush.bf16.msra.mxu0 %v878
        %920 = vmatpush.bf16.msra.mxu0 %v877
        %921 = vmatpush.bf16.msra.mxu0 %v876
        %922 = vmatmul.bf16.gmra.mxu0 %v863
        %v923 = vpop.f32.mrf.mxu0
        %v924 = vadd.f32 %v910, %v923
        %v925 = vpop.f32.mrf.mxu0
        %v926 = vadd.f32 %v912, %v925
        %927 = vdwg.mxu0
        %928 = vmatpush.bf16.msra.mxu0 %v891
        %929 = vmatpush.bf16.msra.mxu0 %v890
        %930 = vmatpush.bf16.msra.mxu0 %v889
        %931 = vmatpush.bf16.msra.mxu0 %v888
        %932 = vmatpush.bf16.msra.mxu0 %v887
        %933 = vmatpush.bf16.msra.mxu0 %v886
        %934 = vmatpush.bf16.msra.mxu0 %v885
        %935 = vmatpush.bf16.msra.mxu0 %v884
        %936 = vmatmul.bf16.gmra.mxu0 %v864
        %v937 = vpop.f32.mrf.mxu0
        %v938 = vadd.f32 %v924, %v937
        %v939 = vpop.f32.mrf.mxu0
        %v940 = vadd.f32 %v926, %v939
        %941 = vdwg.mxu0
        %942 = vmatpush.bf16.msra.mxu0 %v899
        %943 = vmatpush.bf16.msra.mxu0 %v898
        %944 = vmatpush.bf16.msra.mxu0 %v897
        %945 = vmatpush.bf16.msra.mxu0 %v896
        %946 = vmatpush.bf16.msra.mxu0 %v895
        %947 = vmatpush.bf16.msra.mxu0 %v894
        %948 = vmatpush.bf16.msra.mxu0 %v893
        %949 = vmatpush.bf16.msra.mxu0 %v892
        %950 = vmatmul.bf16.gmra.mxu0 %v865
        %v951 = vpop.f32.mrf.mxu0
        %v952 = vadd.f32 %v938, %v951
        %v953 = vpop.f32.mrf.mxu0
        %v954 = vadd.f32 %v940, %v953
        %955 = vdwg.mxu0
        %v956 = vadd.f32 %v866, %v952
        %v957 = vadd.f32 %v867, %v954
        %vm958 = vcmask 261120
        %959 = vst.msk [vmem:[#allocation2] sm:$0xff] %vm958, %v956
        %960 = vst.msk [vmem:[#allocation2 + $0x8] sm:$0xff] %vm958, %v957
        %p961 = scmp.eq.s32.totalorder %s21, 2
        // Predicated region
        $region61: #{vnagg_gin.1} parent=55 // pred_check
          %p962 = pneg %p961
        $region62: #{vnagg_gin.1} parent=55 // pred_check_branch
          %964 = sbr.rel (%p962) target = $region64
        $region63: #{vnagg_gin.1} parent=55 // pred_region
          %v965 = vld [vmem:[%s2] sm:$0xff]
          %v966 = vld [vmem:[%s2 + $0x8] sm:$0xff]
          %v967 = vld [vmem:[#allocation2] sm:$0xff]
          %v968 = vld [vmem:[#allocation2 + $0x8] sm:$0xff]
          %v969 = vadd.f32 %v965, %v967
          %v970 = vadd.f32 %v966, %v968
          %v971 = vld [vmem:[%s3] sm:$0xff]
          %v972 = vld [vmem:[%s3 + $0x8] sm:$0xff]
          %v973 = vld [vmem:[%s3 + $0x10] sm:$0xff]
          %v974 = vld [vmem:[%s3 + $0x18] sm:$0xff]
          %v976 = vsel %vm958, %v969, 0
          %v979 = vsel %vm958, %v970, 0
          %981 = vmatpush.msra.mxu0 0.0
          %982 = vmatpush.msra.mxu0 0.0
          %983 = vmatpush.msra.mxu0 0.0
          %984 = vmatpush.msra.mxu0 0.0
          %985 = vmatpush.msra.mxu0 0.0
          %986 = vmatpush.msra.mxu0 0.0
          %987 = vmatpush.msra.mxu0 0.0
          %988 = vmatpush.msra.mxu0 0.0
          %989 = vmatpush.msra.mxu0 0.0
          %990 = vmatpush.msra.mxu0 0.0
          %991 = vmatpush.msra.mxu0 0.0
          %992 = vmatpush.msra.mxu0 0.0
          %993 = vmatpush.msra.mxu0 %v974
          %994 = vmatpush.msra.mxu0 %v973
          %995 = vmatpush.msra.mxu0 %v972
          %996 = vmatpush.msra.mxu0 %v971
          %997 = vmatmul.f32.gmra.mxu0 %v976
          %v998 = vpop.f32.mrf.mxu0
          %v999 = vadd.f32 0.0, %v998
          %1000 = vmatmul.f32.gmra.mxu0 %v979
          %v1001 = vpop.f32.mrf.mxu0
          %v1002 = vadd.f32 0.0, %v1001
          %1003 = vdwg.mxu0
          %vm1004 = vcmask 523264
          %v1005 = vsel %vm1004, %v999, 0.0
          %v1006 = vsel %vm1004, %v1002, 0.0
          %v1007 = vadd.f32 %v1005, %v1006
          %v1008 = vrot.slane %v1007, 4
          %v1009 = vadd.f32 %v1007, %v1008
          %v1010 = vrot.slane %v1009, 2
          %v1011 = vadd.f32 %v1009, %v1010
          %v1012 = vrot.slane %v1011, 1
          %v1013 = vadd.f32 %v1011, %v1012
          %v1014 = vrcp.pop 16.0
          %v1015 = vmul.f32 16.0, %v1014
          %v1016 = vsub.f32 1.0, %v1015
          %v1017 = vmul.f32 %v1014, %v1016
          %v1018 = vadd.f32 %v1014, %v1017
          %vm1019 = vweird.f32 %v1014
          %v1020 = vsel %vm1019, %v1014, %v1018
          %v1021 = vmul.f32 %v1013, %v1020
          %v1022 = vsub.f32 %v999, %v1021
          %v1023 = vsub.f32 %v1002, %v1021
          %v1024 = vmul.f32 %v1022, %v1022
          %v1025 = vmul.f32 %v1023, %v1023
          %v1026 = vsel %vm1004, %v1024, 0.0
          %v1027 = vsel %vm1004, %v1025, 0.0
          %v1028 = vadd.f32 %v1026, %v1027
          %v1029 = vrot.slane %v1028, 4
          %v1030 = vadd.f32 %v1028, %v1029
          %v1031 = vrot.slane %v1030, 2
          %v1032 = vadd.f32 %v1030, %v1031
          %v1033 = vrot.slane %v1032, 1
          %v1034 = vadd.f32 %v1032, %v1033
          %v1035 = vmul.f32 %v1034, %v1020
          %v1036 = vld [vmem:[%s4] sm:$0x1]
          %v1037 = vadd.f32 %v1035, 1e-05
          %v1038 = vrsqrt.pop %v1037
          %v1039 = vmul.f32 %v1038, %v1037
          %v1040 = vmul.f32 %v1039, %v1038
          %v1041 = vmul.f32 0.5, %v1040
          %v1042 = vsub.f32 1.5, %v1041
          %v1043 = vmul.f32 %v1038, %v1042
          %vm1044 = vweird.f32 %v1037
          %vm1045 = vweird.f32 %v1038
          %vm1046 = vmor %vm1044, %vm1045
          %v1047 = vsel %vm1046, %v1038, %v1043
          %v1048 = vmul.f32 %v1036, %v1047
          %v1049 = vld [vmem:[%s5] sm:$0x1]
          %v1050 = vmul.f32 %v1021, %v1048
          %v1051 = vsub.f32 %v1049, %v1050
          %v1053 = vperm.slane %v1048, 0
          %v1055 = vmul.f32 %v999, %v1053
          %v1056 = vmul.f32 %v1002, %v1053
          %v1058 = vperm.slane %v1051, 0
          %v1060 = vadd.f32 %v1055, %v1058
          %v1061 = vadd.f32 %v1056, %v1058
          %v1062 = vmax.f32 %v1060, 0.0
          %v1063 = vmax.f32 %v1061, 0.0
          %v1064 = vld [vmem:[%s6] sm:$0xff]
          %v1065 = vld [vmem:[%s6 + $0x8] sm:$0xff]
          %v1066 = vld [vmem:[%s6 + $0x10] sm:$0xff]
          %v1067 = vld [vmem:[%s6 + $0x18] sm:$0xff]
          %v1068 = vld [vmem:[%s6 + $0x20] sm:$0xff]
          %v1069 = vld [vmem:[%s6 + $0x28] sm:$0xff]
          %v1070 = vld [vmem:[%s6 + $0x30] sm:$0xff]
          %v1071 = vld [vmem:[%s6 + $0x38] sm:$0xff]
          %v1073 = vsel %vm1004, %v1062, 0
          %v1076 = vsel %vm1004, %v1063, 0
          %1078 = vmatpush.msra.mxu0 0.0
          %1079 = vmatpush.msra.mxu0 0.0
          %1080 = vmatpush.msra.mxu0 0.0
          %1081 = vmatpush.msra.mxu0 0.0
          %1082 = vmatpush.msra.mxu0 0.0
          %1083 = vmatpush.msra.mxu0 0.0
          %1084 = vmatpush.msra.mxu0 0.0
          %1085 = vmatpush.msra.mxu0 0.0
          %1086 = vmatpush.msra.mxu0 %v1071
          %1087 = vmatpush.msra.mxu0 %v1070
          %1088 = vmatpush.msra.mxu0 %v1069
          %1089 = vmatpush.msra.mxu0 %v1068
          %1090 = vmatpush.msra.mxu0 %v1067
          %1091 = vmatpush.msra.mxu0 %v1066
          %1092 = vmatpush.msra.mxu0 %v1065
          %1093 = vmatpush.msra.mxu0 %v1064
          %1094 = vmatmul.f32.gmra.mxu0 %v1073
          %v1095 = vpop.f32.mrf.mxu0
          %v1096 = vadd.f32 0.0, %v1095
          %1097 = vmatmul.f32.gmra.mxu0 %v1076
          %v1098 = vpop.f32.mrf.mxu0
          %v1099 = vadd.f32 0.0, %v1098
          %1100 = vdwg.mxu0
          %v1101 = vsel %vm958, %v1096, 0.0
          %v1102 = vsel %vm958, %v1099, 0.0
          %v1103 = vadd.f32 %v1101, %v1102
          %v1104 = vrot.slane %v1103, 4
          %v1105 = vadd.f32 %v1103, %v1104
          %v1106 = vrot.slane %v1105, 2
          %v1107 = vadd.f32 %v1105, %v1106
          %v1108 = vrot.slane %v1107, 1
          %v1109 = vadd.f32 %v1107, %v1108
          %v1110 = vmul.f32 %v1109, %v1020
          %v1111 = vsub.f32 %v1096, %v1110
          %v1112 = vsub.f32 %v1099, %v1110
          %v1113 = vmul.f32 %v1111, %v1111
          %v1114 = vmul.f32 %v1112, %v1112
          %v1115 = vsel %vm958, %v1113, 0.0
          %v1116 = vsel %vm958, %v1114, 0.0
          %v1117 = vadd.f32 %v1115, %v1116
          %v1118 = vrot.slane %v1117, 4
          %v1119 = vadd.f32 %v1117, %v1118
          %v1120 = vrot.slane %v1119, 2
          %v1121 = vadd.f32 %v1119, %v1120
          %v1122 = vrot.slane %v1121, 1
          %v1123 = vadd.f32 %v1121, %v1122
          %v1124 = vmul.f32 %v1123, %v1020
          %v1125 = vld [vmem:[%s7] sm:$0x1]
          %v1126 = vadd.f32 %v1124, 1e-05
          %v1127 = vrsqrt.pop %v1126
          %v1128 = vmul.f32 %v1127, %v1126
          %v1129 = vmul.f32 %v1128, %v1127
          %v1130 = vmul.f32 0.5, %v1129
          %v1131 = vsub.f32 1.5, %v1130
          %v1132 = vmul.f32 %v1127, %v1131
          %vm1133 = vweird.f32 %v1126
          %vm1134 = vweird.f32 %v1127
          %vm1135 = vmor %vm1133, %vm1134
          %v1136 = vsel %vm1135, %v1127, %v1132
          %v1137 = vmul.f32 %v1125, %v1136
          %v1138 = vld [vmem:[%s8] sm:$0x1]
          %v1139 = vmul.f32 %v1110, %v1137
          %v1140 = vsub.f32 %v1138, %v1139
          %v1142 = vperm.slane %v1137, 0
          %v1144 = vmul.f32 %v1096, %v1142
          %v1145 = vmul.f32 %v1099, %v1142
          %v1147 = vperm.slane %v1140, 0
          %v1149 = vadd.f32 %v1144, %v1147
          %v1150 = vadd.f32 %v1145, %v1147
          %v1151 = vmax.f32 %v1149, 0.0
          %v1152 = vmax.f32 %v1150, 0.0
          %1153 = vst.msk [vmem:[#allocation3] sm:$0xff] %vm958, %v1151
          %1154 = vst.msk [vmem:[#allocation3 + $0x8] sm:$0xff] %vm958, %v1152
        $region64: #{vnagg_gin.1} parent=55 // pred_fallthru
          _
        // Predicated region
        $region65: #{vnagg_gin.1} parent=55 // pred_check
          %p1155 = pneg %p233
        $region66: #{vnagg_gin.1} parent=55 // pred_check_branch
          %1157 = sbr.rel (%p1155) target = $region68
        $region67: #{vnagg_gin.1} parent=55 // pred_region
          %1159 = vsyncadd [#allocation4], 0
          %s1160 = sshll.u32 [#allocation3], 4
          %s1161 = int_to_ptr.vmem [resolvable:$true] %s1160
          %s1162 = sshll.u32 %s9, 4
          %s1163 = int_to_ptr.hbm [resolvable:$true] %s1162
          %1168 = dma.vmem_to_hbm [thread:$0]  %s1161, 256, %s1163, [#allocation4], 128, 128, 8
        $region68: #{vnagg_gin.1} parent=55 // pred_fallthru
          _
        // Predicated region
        $region69: #{vnagg_gin.1} parent=55 // pred_check
          %p1169 = pneg %p233
        $region70: #{vnagg_gin.1} parent=55 // pred_check_branch
          %1171 = sbr.rel (%p1169) target = $region72
        $region71: #{vnagg_gin.1} parent=55 // pred_region
          %1173 = dma.done [#allocation4], 256
        $region72: #{vnagg_gin.1} parent=55 // pred_fallthru
          _
      $region56: #{vnagg_gin.1} parent=5 // pred_fallthru
        _
      %p1174 = scmp.le.s32.totalorder 2, %s16
      // Predicated region
      $region73: #{vnagg_gin.1} parent=5 // pred_check
        %p1175 = pneg %p1174
      $region74: #{vnagg_gin.1} parent=5 // pred_check_branch
        %1177 = sbr.rel (%p1175) target = $region76
      $region75: #{vnagg_gin.1} parent=5 // pred_region
        %s1178 = ssub.s32 %s16, 2
      $region76: #{vnagg_gin.1} parent=5 // pred_fallthru
        _
    $region6: #{vnagg_gin.1} parent=1 // loop_footer
      %s20 = sadd.s32 1, %s16
    $region7: #{vnagg_gin.1} parent=1 // loop_footer_branch
      %15 = sbr.rel target = $region3
    $region8: #{vnagg_gin.1} parent=1 // loop_exit
      _
    %1179 = vsyncpa [#allocation4], 1
    %s1180 = scalar_lea.sflag [#allocation4], 1
    %1181 = vsyncpa %s1180, 1

</llo_original>
